<compile_context>
chip_gen: v5e
topology: v5e:2x2
jax: 0.10.0
libtpu: 0.0.40
codegen_flags: <defaults>
</compile_context>

<pallas_src>
import functools
import math
import random

import numpy as np
import jax
import jax.numpy as jnp
from jax.experimental import pallas as pl
from jax.experimental.pallas import tpu as pltpu

LANE = 128      # lane (last-dim) alignment
SUBLANE = 8     # sublane (second-to-last dim) alignment


def _round_up(n, m):
    return ((n + m - 1) // m) * m


def _pad2d(x, rows, cols, dtype=jnp.float32):
    x = jnp.asarray(x, dtype)
    r, c = x.shape
    if r == rows and c == cols:
        return x
    return jnp.pad(x, ((0, rows - r), (0, cols - c)))


def _device_supports_bf16_eup():
    """bf16 tanh is a win on v6e/v7x (bf16 EUP); keep f32 on v5e."""
    try:
        kind = jax.devices()[0].device_kind.lower()
    except Exception:
        return False
    return ("v6" in kind) or ("v7" in kind) or ("tpu7" in kind)


# ---------------------------------------------------------------------------
# Fused kernel: mean aggregation + attention + projection of Encoder_bl.forward
#
#   neigh_feats = row_normalize(mask) @ embed            (accumulated over U)
#   s_*   = tanh([feat_nodes ; neigh_feats] @ W2)
#   att   = softmax([sum(s_n @ z)/B, sum(s_g @ z)/B])
#   comb  = relu(att0*feat_nodes + att1*neigh_feats)
#   out   = relu(comb @ W^T)        (== relu(W @ comb^T)^T, lane-dense)
# ---------------------------------------------------------------------------
def _fused_encoder_kernel(mask_ref, embed_ref, fn_ref, w2_ref, zt_ref, wt_ref,
                          out_ref, acc_ref, den_ref, *, inv_b, bf16_tanh):
    k = pl.program_id(0)

    @pl.when(k == 0)
    def _():
        acc_ref[...] = jnp.zeros_like(acc_ref)
        den_ref[...] = jnp.zeros_like(den_ref)

    # ---- aggregation step: bf16 operands, f32 MXU accumulator -------------
    m = mask_ref[...]                                           # [Bp, tk] bf16 0/1
    acc_ref[...] += jnp.dot(m, embed_ref[...],
                            preferred_element_type=jnp.float32)
    den_ref[...] += jnp.sum(m.astype(jnp.float32), axis=1, keepdims=True)

    # ---- attention / projection tail, only after the last U tile ----------
    @pl.when(k == pl.num_programs(0) - 1)
    def _():
        den = den_ref[...]
        safe_den = jnp.where(den == 0.0, 1.0, den)              # zero-neighbor guard
        nf = acc_ref[...] * pl.reciprocal(safe_den, approx=True)   # [Bp, Fp]
        fn = fn_ref[...]                                           # [Bp, Fp]
        bp = fn.shape[0]

        # Single matmul for both operands (doubles effective M on the MXU).
        x = jnp.concatenate([fn, nf], axis=0)                      # [2Bp, Fp]
        s = jnp.dot(x, w2_ref[...], preferred_element_type=jnp.float32)  # [2Bp, Hp]
        if bf16_tanh:
            s = jnp.tanh(s.astype(jnp.bfloat16)).astype(jnp.float32)
        else:
            s = jnp.tanh(s)

        # sum(s @ z)/B == sum(s * z^T)/B ; padded rows are zeros so they
        # contribute tanh(0)*z = 0 and inv_b uses the *unpadded* batch size.
        vz = s * zt_ref[...]                                        # [2Bp, Hp]
        u_nodes = jnp.sum(jnp.sum(vz[:bp], axis=1, keepdims=True),
                          axis=0, keepdims=True) * inv_b            # [1, 1]
        u_neighs = jnp.sum(jnp.sum(vz[bp:], axis=1, keepdims=True),
                           axis=0, keepdims=True) * inv_b           # [1, 1]

        # 2-way softmax (max-subtracted, exact divide for the denominator).
        max_v = jnp.maximum(u_nodes, u_neighs)
        e0 = jnp.exp(u_nodes - max_v)
        e1 = jnp.exp(u_neighs - max_v)
        denom = e0 + e1
        a0 = e0 / denom
        a1 = e1 / denom

        combined = jnp.maximum(a0 * fn + a1 * nf, 0.0)              # [Bp, Fp]
        out_ref[...] = jnp.maximum(
            jnp.dot(combined, wt_ref[...], preferred_element_type=jnp.float32),
            0.0)


def encoder_bl_fused(mask, neigh_embed, feat_nodes, weight, weight_2, z,
                     *, bf16_tanh=None):
    """Returns relu(W @ relu(att0*feat + att1*neigh).T) of shape [embed_dim, B]."""
    B, U = mask.shape
    _, F = neigh_embed.shape
    E = weight.shape[0]
    H = weight_2.shape[1]

    if bf16_tanh is None:
        bf16_tanh = _device_supports_bf16_eup()

    Bp = _round_up(B, SUBLANE)
    Fp = _round_up(F, LANE)
    Ep = _round_up(E, LANE)
    Hp = _round_up(H, LANE)
    # Large contraction tile over the unique-neighbor axis (256-multiple when U
    # is big) to fill the MXU and amortize per-grid-step overhead; a single
    # tile when U is small.
    tk = 512 if U > 512 else _round_up(max(U, 1), LANE)
    Up = _round_up(max(U, 1), tk)

    # Zero padding is load-bearing: padded rows/cols must stay zero so the
    # attention scalars and the output matmul are unaffected (see kernel).
    mask_p = _pad2d(mask, Bp, Up, jnp.bfloat16)                 # 0/1 exact in bf16
    embed_p = _pad2d(neigh_embed, Up, Fp, jnp.bfloat16)
    fn_p = _pad2d(feat_nodes, Bp, Fp)
    w2_p = _pad2d(weight_2, Fp, Hp)
    zt_p = _pad2d(jnp.asarray(z, jnp.float32).T, 1, Hp)         # [1, Hp]
    wt_p = _pad2d(jnp.asarray(weight, jnp.float32).T, Fp, Ep)   # [Fp, Ep]

    grid = (Up // tk,)                                          # reduction axis only
    out_p = pl.pallas_call(
        functools.partial(_fused_encoder_kernel,
                          inv_b=1.0 / float(B), bf16_tanh=bool(bf16_tanh)),
        out_shape=jax.ShapeDtypeStruct((Bp, Ep), jnp.float32),
        grid_spec=pltpu.PrefetchScalarGridSpec(
            num_scalar_prefetch=0,
            grid=grid,
            in_specs=[pl.BlockSpec((Bp, tk), lambda k: (0, k)),   # mask tile
                      pl.BlockSpec((tk, Fp), lambda k: (k, 0)),   # embed tile
                      pl.BlockSpec((Bp, Fp), lambda k: (0, 0)),   # feat_nodes
                      pl.BlockSpec((Fp, Hp), lambda k: (0, 0)),   # W2
                      pl.BlockSpec((1, Hp), lambda k: (0, 0)),    # z^T
                      pl.BlockSpec((Fp, Ep), lambda k: (0, 0))],  # W^T
            out_specs=pl.BlockSpec((Bp, Ep), lambda k: (0, 0)),
            scratch_shapes=[pltpu.VMEM((Bp, Fp), jnp.float32),    # neigh_feats acc
                            pltpu.VMEM((Bp, 1), jnp.float32)],    # neighbor counts
        ),
        compiler_params=pltpu.CompilerParams(
            dimension_semantics=("arbitrary",)),
    )(mask_p, embed_p, fn_p, w2_p, zt_p, wt_p)
    # TODO(synk): for very large B, restructure as a two-phase grid over B
    # (phase 1 accumulates the two attention scalars, phase 2 emits per-B-tile
    # outputs) to bound VMEM and unlock megacore sharding on v7x.
    return out_p[:B, :E].T                                        # [E, B]


# ---------------------------------------------------------------------------
# Python glue replicating the graph-side logic of the PyTorch module
# ---------------------------------------------------------------------------
def build_mask_and_unique(nodes, to_neighs, num_sample, gcn=False):
    if num_sample is not None:
        samp_neighs = [
            set(random.sample(sorted(tn), num_sample)) if len(tn) >= num_sample else set(tn)
            for tn in to_neighs
        ]
    else:
        samp_neighs = [set(tn) for tn in to_neighs]
    if gcn:
        samp_neighs = [sn | {nodes[i]} for i, sn in enumerate(samp_neighs)]

    unique_nodes_list = sorted(set.union(*samp_neighs)) if samp_neighs else []
    unique_nodes = {n: i for i, n in enumerate(unique_nodes_list)}

    B = len(samp_neighs)
    U = max(len(unique_nodes_list), 1)
    mask = np.zeros((B, U), dtype=np.float32)
    for i, sn in enumerate(samp_neighs):
        for n in sn:
            mask[i, unique_nodes[n]] = 1.0
    return mask, unique_nodes_list


def encoder_bl_forward(nodes, adj_lists, features, weight, weight_2, z,
                       num_sample=10, gcn=False):
    """Pallas-backed equivalent of Encoder_bl.forward (eval-mode)."""
    to_neighs = [adj_lists[int(n)] for n in nodes]
    mask_np, unique_nodes_list = build_mask_and_unique(nodes, to_neighs, num_sample, gcn)

    features_np = np.asarray(features)
    if unique_nodes_list:
        neigh_embed_np = features_np[np.asarray(unique_nodes_list, dtype=np.int64)]
    else:
        neigh_embed_np = np.zeros((1, features_np.shape[1]), dtype=np.float32)
    # TODO(synk): this unique-node embedding gather stays on the host (it is plain
    # Python in the PyTorch module too); for large graphs it could be fused into the
    # kernel via PrefetchScalarGridSpec + pl.Element row blocks (data-dependent DMA).

    feat_nodes = jnp.asarray(features)[jnp.asarray(list(nodes), dtype=jnp.int32)]  # self.features(nodes)

    out = encoder_bl_fused(jnp.asarray(mask_np),
                           jnp.asarray(neigh_embed_np, jnp.float32),
                           feat_nodes, weight, weight_2, z)                          # [E, B]
    # TODO(synk): F.dropout(p=0.2, training=self.training) omitted (eval-mode identity).
    return out, (mask_np, np.asarray(neigh_embed_np, np.float32), np.asarray(feat_nodes))


# ---------------------------------------------------------------------------
# Pure-numpy reference of the same forward (float64)
# ---------------------------------------------------------------------------
def reference_forward(mask, neigh_embed, feat_nodes, weight, weight_2, z):
    mask = mask.astype(np.float64)
    neigh_embed = neigh_embed.astype(np.float64)
    feat_nodes = feat_nodes.astype(np.float64)

    num_neigh = mask.sum(1, keepdims=True)
    safe = np.where(num_neigh == 0.0, 1.0, num_neigh)
    neigh_feats = (mask / safe) @ neigh_embed

    s_nodes = np.tanh(feat_nodes @ weight_2)
    s_neighs = np.tanh(neigh_feats @ weight_2)
    u_nodes = s_nodes @ z
    u_neighs = s_neighs @ z
    sum_nodes = u_nodes.sum() / s_nodes.shape[0]
    sum_neighs = u_neighs.sum() / s_neighs.shape[0]
    values = np.array([sum_nodes, sum_neighs])
    e = np.exp(values - values.max())
    att = e / e.sum()
    combined = np.maximum(att[0] * feat_nodes + att[1] * neigh_feats, 0.0)
    return np.maximum(weight @ combined.T, 0.0)


if __name__ == "__main__":
    random.seed(0)
    key = jax.random.PRNGKey(0)

    # Small shapes consistent with the module (hidden=1024 is hard-coded in it).
    num_nodes = 20
    feat_dim = 32
    embed_dim = 32
    hidden = 1024
    num_sample = 5
    nodes = list(range(8))

    k1, k2, k3, k4 = jax.random.split(key, 4)
    features = jax.random.normal(k1, (num_nodes, feat_dim), dtype=jnp.float32)
    a_w = math.sqrt(6.0 / (embed_dim + feat_dim))
    weight = jax.random.uniform(k2, (embed_dim, feat_dim), jnp.float32, -a_w, a_w)
    a_w2 = 1.414 * math.sqrt(6.0 / (feat_dim + hidden))
    weight_2 = jax.random.uniform(k3, (feat_dim, hidden), jnp.float32, -a_w2, a_w2)
    a_z = math.sqrt(6.0 / (hidden + 1))
    z = jax.random.uniform(k4, (hidden, 1), jnp.float32, -a_z, a_z)

    # Synthetic adjacency lists (deterministic); node 7 has no neighbors to
    # exercise the zero-neighbor guard.
    rng = np.random.RandomState(0)
    adj_lists = {}
    for i in range(num_nodes):
        deg = int(rng.randint(3, 9))
        adj_lists[i] = set(int(x) for x in rng.choice(num_nodes, size=deg, replace=False))
    adj_lists[7] = set()

    out, (mask_np, neigh_embed_np, feat_nodes_np) = encoder_bl_forward(
        nodes, adj_lists, features, weight, weight_2, z,
        num_sample=num_sample, gcn=False)
    out = jax.block_until_ready(out)
    assert out.shape == (embed_dim, len(nodes))

    ref = reference_forward(mask_np, neigh_embed_np, feat_nodes_np,
                            np.asarray(weight, np.float64),
                            np.asarray(weight_2, np.float64),
                            np.asarray(z, np.float64))
    # Tolerance covers bf16 aggregation operands + (on v6e/v7x) bf16 tanh.
    assert np.allclose(np.asarray(out), ref, atol=3e-2, rtol=3e-2), \
        float(np.max(np.abs(np.asarray(out) - ref)))

    print("KERNEL_OK")
</pallas_src>

<mosaic_0001>
module attributes {stable_mosaic.version = 11 : i64} {
  func.func @_fused_encoder_kernel(%arg0: i32, %arg1: memref<8x128xbf16, #tpu.memory_space<vmem>>, %arg2: memref<128x128xbf16, #tpu.memory_space<vmem>>, %arg3: memref<8x128xf32, #tpu.memory_space<vmem>>, %arg4: memref<128x1024xf32, #tpu.memory_space<vmem>>, %arg5: memref<1x1024xf32, #tpu.memory_space<vmem>>, %arg6: memref<128x128xf32, #tpu.memory_space<vmem>>, %arg7: memref<8x128xf32, #tpu.memory_space<vmem>>, %arg8: memref<8x128xf32, #tpu.memory_space<vmem>>, %arg9: memref<8x1xf32, #tpu.memory_space<vmem>>) attributes {dimension_semantics = [#tpu.dimension_semantics<arbitrary>], iteration_bounds = array<i64: 1>, scalar_prefetch = 0 : i64, scratch_operands = 2 : i64, tpu.core_type = #tpu.core_type<tc>, window_params = [{transform_indices = @transform_0, window_bounds = array<i64: 8, 128>}, {transform_indices = @transform_1, window_bounds = array<i64: 128, 128>}, {pipeline_mode = #tpu.pipeline_mode<synchronous>, transform_indices = @transform_2, window_bounds = array<i64: 8, 128>}, {pipeline_mode = #tpu.pipeline_mode<synchronous>, transform_indices = @transform_3, window_bounds = array<i64: 128, 1024>}, {pipeline_mode = #tpu.pipeline_mode<synchronous>, transform_indices = @transform_4, window_bounds = array<i64: 1, 1024>}, {pipeline_mode = #tpu.pipeline_mode<synchronous>, transform_indices = @transform_5, window_bounds = array<i64: 128, 128>}, {pipeline_mode = #tpu.pipeline_mode<synchronous>, transform_indices = @transform_6, window_bounds = array<i64: 8, 128>}]} {
    %c0_i32 = arith.constant 0 : i32
    %0 = arith.cmpi eq, %arg0, %c0_i32 : i32
    %1 = arith.extui %0 : i1 to i32
    %c0_i32_0 = arith.constant 0 : i32
    %2 = arith.cmpi ne, %1, %c0_i32_0 : i32
    scf.if %2 {
      %cst_15 = arith.constant 0.000000e+00 : f32
      %18 = vector.broadcast %cst_15 : f32 to vector<8x128xf32>
      %c0_16 = arith.constant 0 : index
      %c0_17 = arith.constant 0 : index
      %19 = vector.load %arg8[%c0_16, %c0_17] : memref<8x128xf32, #tpu.memory_space<vmem>>, vector<8x128xf32>
      tpu.vector_store %arg8[%c0_16, %c0_17], %18 {strides = array<i32>} : memref<8x128xf32, #tpu.memory_space<vmem>>, vector<8x128xf32>,
      %cst_18 = arith.constant 0.000000e+00 : f32
      %20 = vector.broadcast %cst_18 : f32 to vector<8x1xf32>
      %c0_19 = arith.constant 0 : index
      %c0_20 = arith.constant 0 : index
      %21 = vector.load %arg9[%c0_19, %c0_20] : memref<8x1xf32, #tpu.memory_space<vmem>>, vector<8x1xf32>
      tpu.vector_store %arg9[%c0_19, %c0_20], %20 {strides = array<i32>} : memref<8x1xf32, #tpu.memory_space<vmem>>, vector<8x1xf32>,
    } else {
    }
    %c0 = arith.constant 0 : index
    %c0_1 = arith.constant 0 : index
    %3 = vector.load %arg1[%c0, %c0_1] : memref<8x128xbf16, #tpu.memory_space<vmem>>, vector<8x128xbf16>
    %c0_2 = arith.constant 0 : index
    %c0_3 = arith.constant 0 : index
    %4 = vector.load %arg8[%c0_2, %c0_3] : memref<8x128xf32, #tpu.memory_space<vmem>>, vector<8x128xf32>
    %c0_4 = arith.constant 0 : index
    %c0_5 = arith.constant 0 : index
    %5 = vector.load %arg2[%c0_4, %c0_5] : memref<128x128xbf16, #tpu.memory_space<vmem>>, vector<128x128xbf16>
    %cst = arith.constant dense<0.000000e+00> : vector<8x128xf32>
    %6 = tpu.matmul %3, %5, %cst {dimension_numbers = #tpu.dot_dimension_numbers<[1], [0], [0], [1], [0, 0, 1, 1], [], []>} : vector<8x128xbf16>, vector<128x128xbf16>, vector<8x128xf32> -> vector<8x128xf32>
    %7 = arith.addf %4, %6 : vector<8x128xf32>
    %c0_6 = arith.constant 0 : index
    %c0_7 = arith.constant 0 : index
    %8 = vector.load %arg8[%c0_6, %c0_7] : memref<8x128xf32, #tpu.memory_space<vmem>>, vector<8x128xf32>
    tpu.vector_store %arg8[%c0_6, %c0_7], %7 {strides = array<i32>} : memref<8x128xf32, #tpu.memory_space<vmem>>, vector<8x128xf32>,
    %c0_8 = arith.constant 0 : index
    %c0_9 = arith.constant 0 : index
    %9 = vector.load %arg9[%c0_8, %c0_9] : memref<8x1xf32, #tpu.memory_space<vmem>>, vector<8x1xf32>
    %10 = arith.extf %3 : vector<8x128xbf16> to vector<8x128xf32>
    %cst_10 = arith.constant dense<0.000000e+00> : vector<8xf32>
    %11 = vector.multi_reduction <add>, %10, %cst_10 [1] : vector<8x128xf32> to vector<8xf32>
    %12 = vector.shape_cast %11 : vector<8xf32> to vector<8x1xf32>
    %13 = arith.addf %9, %12 : vector<8x1xf32>
    %c0_11 = arith.constant 0 : index
    %c0_12 = arith.constant 0 : index
    %14 = vector.load %arg9[%c0_11, %c0_12] : memref<8x1xf32, #tpu.memory_space<vmem>>, vector<8x1xf32>
    tpu.vector_store %arg9[%c0_11, %c0_12], %13 {strides = array<i32>} : memref<8x1xf32, #tpu.memory_space<vmem>>, vector<8x1xf32>,
    %c0_i32_13 = arith.constant 0 : i32
    %15 = arith.cmpi eq, %arg0, %c0_i32_13 : i32
    %16 = arith.extui %15 : i1 to i32
    %c0_i32_14 = arith.constant 0 : i32
    %17 = arith.cmpi ne, %16, %c0_i32_14 : i32
    scf.if %17 {
      %c0_15 = arith.constant 0 : index
      %c0_16 = arith.constant 0 : index
      %18 = vector.load %arg9[%c0_15, %c0_16] : memref<8x1xf32, #tpu.memory_space<vmem>>, vector<8x1xf32>
      %cst_17 = arith.constant 0.000000e+00 : f32
      %19 = vector.broadcast %cst_17 : f32 to vector<8x1xf32>
      %20 = arith.cmpf oeq, %18, %19 : vector<8x1xf32>
      %cst_18 = arith.constant 1.000000e+00 : f32
      %21 = vector.broadcast %cst_18 : f32 to vector<8x1xf32>
      %22 = arith.select %20, %21, %18 : vector<8x1xi1>, vector<8x1xf32>
      %c0_19 = arith.constant 0 : index
      %c0_20 = arith.constant 0 : index
      %23 = vector.load %arg8[%c0_19, %c0_20] : memref<8x128xf32, #tpu.memory_space<vmem>>, vector<8x128xf32>
      %24 = tpu.reciprocal %22 {approx = true} : vector<8x1xf32> -> vector<8x1xf32>
      %25 = vector.broadcast %24 : vector<8x1xf32> to vector<8x128xf32>
      %26 = arith.mulf %23, %25 : vector<8x128xf32>
      %c0_21 = arith.constant 0 : index
      %c0_22 = arith.constant 0 : index
      %27 = vector.load %arg3[%c0_21, %c0_22] : memref<8x128xf32, #tpu.memory_space<vmem>>, vector<8x128xf32>
      %28 = tpu.concatenate %27, %26 in 0 : vector<8x128xf32>, vector<8x128xf32> -> vector<16x128xf32>
      %c0_23 = arith.constant 0 : index
      %c0_24 = arith.constant 0 : index
      %29 = vector.load %arg4[%c0_23, %c0_24] : memref<128x1024xf32, #tpu.memory_space<vmem>>, vector<128x1024xf32>
      %cst_25 = arith.constant dense<0.000000e+00> : vector<16x1024xf32>
      %30 = tpu.matmul %28, %29, %cst_25 {dimension_numbers = #tpu.dot_dimension_numbers<[1], [0], [0], [1], [0, 0, 1, 1], [], []>} : vector<16x128xf32>, vector<128x1024xf32>, vector<16x1024xf32> -> vector<16x1024xf32>
      %31 = math.tanh %30 : vector<16x1024xf32>
      %c0_26 = arith.constant 0 : index
      %c0_27 = arith.constant 0 : index
      %32 = vector.load %arg5[%c0_26, %c0_27] : memref<1x1024xf32, #tpu.memory_space<vmem>>, vector<1x1024xf32>
      %33 = vector.broadcast %32 : vector<1x1024xf32> to vector<16x1024xf32>
      %34 = arith.mulf %31, %33 : vector<16x1024xf32>
      %35 = vector.extract_strided_slice %34 {offsets = [0, 0], sizes = [8, 1024], strides = [1, 1]} : vector<16x1024xf32> to vector<8x1024xf32>
      %cst_28 = arith.constant dense<0.000000e+00> : vector<8xf32>
      %36 = vector.multi_reduction <add>, %35, %cst_28 [1] : vector<8x1024xf32> to vector<8xf32>
      %37 = vector.shape_cast %36 : vector<8xf32> to vector<8x1xf32>
      %cst_29 = arith.constant dense<0.000000e+00> : vector<1xf32>
      %38 = vector.multi_reduction <add>, %37, %cst_29 [0] : vector<8x1xf32> to vector<1xf32>
      %39 = vector.shape_cast %38 : vector<1xf32> to vector<1x1xf32>
      %cst_30 = arith.constant 1.250000e-01 : f32
      %40 = vector.broadcast %cst_30 : f32 to vector<1x1xf32>
      %41 = arith.mulf %39, %40 : vector<1x1xf32>
      %42 = vector.extract_strided_slice %34 {offsets = [8, 0], sizes = [8, 1024], strides = [1, 1]} : vector<16x1024xf32> to vector<8x1024xf32>
      %cst_31 = arith.constant dense<0.000000e+00> : vector<8xf32>
      %43 = vector.multi_reduction <add>, %42, %cst_31 [1] : vector<8x1024xf32> to vector<8xf32>
      %44 = vector.shape_cast %43 : vector<8xf32> to vector<8x1xf32>
      %cst_32 = arith.constant dense<0.000000e+00> : vector<1xf32>
      %45 = vector.multi_reduction <add>, %44, %cst_32 [0] : vector<8x1xf32> to vector<1xf32>
      %46 = vector.shape_cast %45 : vector<1xf32> to vector<1x1xf32>
      %cst_33 = arith.constant 1.250000e-01 : f32
      %47 = vector.broadcast %cst_33 : f32 to vector<1x1xf32>
      %48 = arith.mulf %46, %47 : vector<1x1xf32>
      %49 = arith.maximumf %41, %48 : vector<1x1xf32>
      %50 = arith.subf %41, %49 : vector<1x1xf32>
      %51 = math.exp %50 : vector<1x1xf32>
      %52 = arith.subf %48, %49 : vector<1x1xf32>
      %53 = math.exp %52 : vector<1x1xf32>
      %54 = arith.addf %51, %53 : vector<1x1xf32>
      %55 = arith.divf %51, %54 : vector<1x1xf32>
      %56 = arith.divf %53, %54 : vector<1x1xf32>
      %57 = vector.broadcast %55 : vector<1x1xf32> to vector<8x128xf32>
      %58 = arith.mulf %57, %27 : vector<8x128xf32>
      %59 = vector.broadcast %56 : vector<1x1xf32> to vector<8x128xf32>
      %60 = arith.mulf %59, %26 : vector<8x128xf32>
      %61 = arith.addf %58, %60 : vector<8x128xf32>
      %cst_34 = arith.constant 0.000000e+00 : f32
      %62 = vector.broadcast %cst_34 : f32 to vector<8x128xf32>
      %63 = arith.maximumf %61, %62 : vector<8x128xf32>
      %c0_35 = arith.constant 0 : index
      %c0_36 = arith.constant 0 : index
      %64 = vector.load %arg6[%c0_35, %c0_36] : memref<128x128xf32, #tpu.memory_space<vmem>>, vector<128x128xf32>
      %cst_37 = arith.constant dense<0.000000e+00> : vector<8x128xf32>
      %65 = tpu.matmul %63, %64, %cst_37 {dimension_numbers = #tpu.dot_dimension_numbers<[1], [0], [0], [1], [0, 0, 1, 1], [], []>} : vector<8x128xf32>, vector<128x128xf32>, vector<8x128xf32> -> vector<8x128xf32>
      %cst_38 = arith.constant 0.000000e+00 : f32
      %66 = vector.broadcast %cst_38 : f32 to vector<8x128xf32>
      %67 = arith.maximumf %65, %66 : vector<8x128xf32>
      %c0_39 = arith.constant 0 : index
      %c0_40 = arith.constant 0 : index
      %68 = vector.load %arg7[%c0_39, %c0_40] : memref<8x128xf32, #tpu.memory_space<vmem>>, vector<8x128xf32>
      tpu.vector_store %arg7[%c0_39, %c0_40], %67 {strides = array<i32>} : memref<8x128xf32, #tpu.memory_space<vmem>>, vector<8x128xf32>,
    } else {
    }
    return
  }
  func.func @transform_0(%arg0: i32) -> (i32, i32) {
    %c0_i32 = arith.constant 0 : i32
    %c0_i32_0 = arith.constant 0 : i32
    return %c0_i32, %arg0 : i32, i32
  }
  func.func @transform_1(%arg0: i32) -> (i32, i32) {
    %c0_i32 = arith.constant 0 : i32
    %c0_i32_0 = arith.constant 0 : i32
    return %arg0, %c0_i32 : i32, i32
  }
  func.func @transform_2(%arg0: i32) -> (i32, i32) {
    %c0_i32 = arith.constant 0 : i32
    %c0_i32_0 = arith.constant 0 : i32
    %c0_i32_1 = arith.constant 0 : i32
    return %c0_i32, %c0_i32_0 : i32, i32
  }
  func.func @transform_3(%arg0: i32) -> (i32, i32) {
    %c0_i32 = arith.constant 0 : i32
    %c0_i32_0 = arith.constant 0 : i32
    %c0_i32_1 = arith.constant 0 : i32
    return %c0_i32, %c0_i32_0 : i32, i32
  }
  func.func @transform_4(%arg0: i32) -> (i32, i32) {
    %c0_i32 = arith.constant 0 : i32
    %c0_i32_0 = arith.constant 0 : i32
    %c0_i32_1 = arith.constant 0 : i32
    return %c0_i32, %c0_i32_0 : i32, i32
  }
  func.func @transform_5(%arg0: i32) -> (i32, i32) {
    %c0_i32 = arith.constant 0 : i32
    %c0_i32_0 = arith.constant 0 : i32
    %c0_i32_1 = arith.constant 0 : i32
    return %c0_i32, %c0_i32_0 : i32, i32
  }
  func.func @transform_6(%arg0: i32) -> (i32, i32) {
    %c0_i32 = arith.constant 0 : i32
    %c0_i32_0 = arith.constant 0 : i32
    %c0_i32_1 = arith.constant 0 : i32
    return %c0_i32, %c0_i32_0 : i32, i32
  }
}

</mosaic_0001>

<llo_original>
// kernel: tpu_custom_call.1
$region0: #{tpu_custom_call.1}
  #allocation0 [shape = 'u32[]', space=smem, size = 0x4, offset = 0x4, fixed_abs, tag = 'smem constant byte address 0x4 - core index']
  #allocation1 [shape = 'u32[72,128]{1,0:T(1,128)}', space=vmem, size = 0x9000, scoped, tag = 'internal scratch']
  #allocation2 [shape = 'f32[8,128]{1,0:T(8,128)}', space=vmem, size = 0x1000, scoped, tag = 'scratch operand']
  #allocation3 [shape = 'f32[8,1]{1,0:T(8,128)}', space=vmem, size = 0x1000, scoped, tag = 'scratch operand']
  %s0 = inlined_call_operand.hbm [shape: bf16[8,128], index: 0, kind: input, shape index: {}]
  %s1 = inlined_call_operand.hbm [shape: bf16[128,128], index: 1, kind: input, shape index: {}]
  %s2 = inlined_call_operand.hbm [shape: f32[8,128], index: 2, kind: input, shape index: {}]
  %s3 = inlined_call_operand.hbm [shape: f32[128,1024], index: 3, kind: input, shape index: {}]
  %s4 = inlined_call_operand.hbm [shape: f32[1,1024], index: 4, kind: input, shape index: {}]
  %s5 = inlined_call_operand.hbm [shape: f32[128,128], index: 5, kind: input, shape index: {}]
  %s6 = inlined_call_operand.hbm [shape: f32[8,128], index: 6, kind: output, shape index: {}]
  %s7 = sld [smem:[#allocation0]]
  $region66: #{tpu_custom_call.1} parent=0
    _
  %s9 = ssub.s32 1, %s7
  %s10 = scalar_select 0, %s9, %s7
  $region1: #{tpu_custom_call.1} parent=0
    #allocation4 [shape = 'u8[2048]{0}', space=vmem, size = 0x800, scoped, tag = 'input window, operand 0, single buffered']
    #allocation5 [shape = 's32[1]{0}', space=sflag, size = 0x4, scoped, tag = 'scoped memory for tpu_custom_call.1']
    #allocation6 [shape = 's32[1]{0}', space=sflag, size = 0x4, scoped, tag = 'scoped memory for tpu_custom_call.1']
    #allocation7 [shape = 'u8[32768]{0}', space=vmem, size = 0x8000, scoped, tag = 'input window, operand 1, single buffered']
    #allocation8 [shape = 's32[1]{0}', space=sflag, size = 0x4, scoped, tag = 'scoped memory for tpu_custom_call.1']
    #allocation9 [shape = 'u8[4096]{0}', space=vmem, size = 0x1000, scoped, tag = 'input window, operand 2, single buffered']
    #allocation10 [shape = 'u8[524288]{0}', space=vmem, size = 0x80000, scoped, tag = 'input window, operand 3, single buffered']
    #allocation11 [shape = 's32[1]{0}', space=sflag, size = 0x4, scoped, tag = 'scoped memory for tpu_custom_call.1']
    #allocation12 [shape = 'u8[4096]{0}', space=vmem, size = 0x1000, scoped, tag = 'input window, operand 4, single buffered']
    #allocation13 [shape = 'u8[65536]{0}', space=vmem, size = 0x10000, scoped, tag = 'input window, operand 5, single buffered']
    #allocation14 [shape = 's32[1]{0}', space=sflag, size = 0x4, scoped, tag = 'scoped memory for tpu_custom_call.1']
    #allocation15 [shape = 'u8[4096]{0}', space=vmem, size = 0x1000, scoped, tag = 'output window, operand 0, single buffered']
    %11 = vsyncpa [#allocation5], 0
    %12 = vsyncpa [#allocation8], 0
    %13 = vsyncpa [#allocation11], 0
    %14 = vsyncpa [#allocation14], 0
    %15 = vsyncpa [#allocation6], 0
    // Predicated region
    $region2: #{tpu_custom_call.1} parent=1 // pred_check
      _
    $region3: #{tpu_custom_call.1} parent=1 // pred_check_branch
      %17 = sbr.rel (0) target = $region5
    $region4: #{tpu_custom_call.1} parent=1 // pred_region
      %19 = vsyncadd [#allocation5], 0
      %s21 = sshll.u32 %s0, 4
      %s22 = int_to_ptr.hbm [resolvable:$true] %s21
      %s23 = sshll.u32 [#allocation4], 4
      %s24 = int_to_ptr.vmem [resolvable:$true] %s23
      %26 = dma.hbm_to_vmem [thread:$0]  %s22, 64, %s24, [#allocation5]
    $region5: #{tpu_custom_call.1} parent=1 // pred_fallthru
      _
    // Predicated region
    $region6: #{tpu_custom_call.1} parent=1 // pred_check
      _
    $region7: #{tpu_custom_call.1} parent=1 // pred_check_branch
      %28 = sbr.rel (0) target = $region9
    $region8: #{tpu_custom_call.1} parent=1 // pred_region
      %30 = vsyncadd [#allocation8], 0
      %s31 = sshll.u32 %s1, 4
      %s32 = int_to_ptr.hbm [resolvable:$true] %s31
      %s33 = sshll.u32 [#allocation7], 4
      %s34 = int_to_ptr.vmem [resolvable:$true] %s33
      %39 = dma.hbm_to_vmem [thread:$0]  %s32, 1024, %s34, [#allocation8], 64, 64, 4
    $region9: #{tpu_custom_call.1} parent=1 // pred_fallthru
      _
    // Predicated region
    $region10: #{tpu_custom_call.1} parent=1 // pred_check
      _
    $region11: #{tpu_custom_call.1} parent=1 // pred_check_branch
      %41 = sbr.rel (0) target = $region13
    $region12: #{tpu_custom_call.1} parent=1 // pred_region
      %43 = vsyncadd [#allocation8], 0
      %s45 = sshll.u32 %s2, 4
      %s46 = int_to_ptr.hbm [resolvable:$true] %s45
      %s47 = sshll.u32 [#allocation9], 4
      %s48 = int_to_ptr.vmem [resolvable:$true] %s47
      %50 = dma.hbm_to_vmem [thread:$0]  %s46, 128, %s48, [#allocation8]
    $region13: #{tpu_custom_call.1} parent=1 // pred_fallthru
      _
    // Predicated region
    $region14: #{tpu_custom_call.1} parent=1 // pred_check
      _
    $region15: #{tpu_custom_call.1} parent=1 // pred_check_branch
      %52 = sbr.rel (0) target = $region17
    $region16: #{tpu_custom_call.1} parent=1 // pred_region
      %54 = vsyncadd [#allocation11], 0
      %s55 = sshll.u32 %s3, 4
      %s56 = int_to_ptr.hbm [resolvable:$true] %s55
      %s57 = sshll.u32 [#allocation10], 4
      %s58 = int_to_ptr.vmem [resolvable:$true] %s57
      %63 = dma.hbm_to_vmem [thread:$0]  %s56, 16384, %s58, [#allocation11], 1024, 1024, 64
    $region17: #{tpu_custom_call.1} parent=1 // pred_fallthru
      _
    // Predicated region
    $region18: #{tpu_custom_call.1} parent=1 // pred_check
      _
    $region19: #{tpu_custom_call.1} parent=1 // pred_check_branch
      %65 = sbr.rel (0) target = $region21
    $region20: #{tpu_custom_call.1} parent=1 // pred_region
      %67 = vsyncadd [#allocation11], 0
      %s69 = sshll.u32 %s4, 4
      %s70 = int_to_ptr.hbm [resolvable:$true] %s69
      %s71 = sshll.u32 [#allocation12], 4
      %s72 = int_to_ptr.vmem [resolvable:$true] %s71
      %74 = dma.hbm_to_vmem [thread:$0]  %s70, 128, %s72, [#allocation11]
    $region21: #{tpu_custom_call.1} parent=1 // pred_fallthru
      _
    // Predicated region
    $region22: #{tpu_custom_call.1} parent=1 // pred_check
      _
    $region23: #{tpu_custom_call.1} parent=1 // pred_check_branch
      %76 = sbr.rel (0) target = $region25
    $region24: #{tpu_custom_call.1} parent=1 // pred_region
      %78 = vsyncadd [#allocation14], 0
      %s79 = sshll.u32 %s5, 4
      %s80 = int_to_ptr.hbm [resolvable:$true] %s79
      %s81 = sshll.u32 [#allocation13], 4
      %s82 = int_to_ptr.vmem [resolvable:$true] %s81
      %87 = dma.hbm_to_vmem [thread:$0]  %s80, 2048, %s82, [#allocation14], 128, 128, 8
    $region25: #{tpu_custom_call.1} parent=1 // pred_fallthru
      _
    // Predicated region
    $region26: #{tpu_custom_call.1} parent=1 // pred_check
      _
    $region27: #{tpu_custom_call.1} parent=1 // pred_check_branch
      %89 = sbr.rel (0) target = $region29
    $region28: #{tpu_custom_call.1} parent=1 // pred_region
      %91 = dma.done [#allocation5], 64
    $region29: #{tpu_custom_call.1} parent=1 // pred_fallthru
      _
    // Predicated region
    $region30: #{tpu_custom_call.1} parent=1 // pred_check
      _
    $region31: #{tpu_custom_call.1} parent=1 // pred_check_branch
      %93 = sbr.rel (0) target = $region33
    $region32: #{tpu_custom_call.1} parent=1 // pred_region
      %95 = dma.done [#allocation8], 1024
    $region33: #{tpu_custom_call.1} parent=1 // pred_fallthru
      _
    // Predicated region
    $region34: #{tpu_custom_call.1} parent=1 // pred_check
      _
    $region35: #{tpu_custom_call.1} parent=1 // pred_check_branch
      %97 = sbr.rel (0) target = $region37
    $region36: #{tpu_custom_call.1} parent=1 // pred_region
      %99 = dma.done [#allocation8], 128
    $region37: #{tpu_custom_call.1} parent=1 // pred_fallthru
      _
    // Predicated region
    $region38: #{tpu_custom_call.1} parent=1 // pred_check
      _
    $region39: #{tpu_custom_call.1} parent=1 // pred_check_branch
      %101 = sbr.rel (0) target = $region41
    $region40: #{tpu_custom_call.1} parent=1 // pred_region
      %103 = dma.done [#allocation11], 16384
    $region41: #{tpu_custom_call.1} parent=1 // pred_fallthru
      _
    // Predicated region
    $region42: #{tpu_custom_call.1} parent=1 // pred_check
      _
    $region43: #{tpu_custom_call.1} parent=1 // pred_check_branch
      %105 = sbr.rel (0) target = $region45
    $region44: #{tpu_custom_call.1} parent=1 // pred_region
      %107 = dma.done [#allocation11], 128
    $region45: #{tpu_custom_call.1} parent=1 // pred_fallthru
      _
    // Predicated region
    $region46: #{tpu_custom_call.1} parent=1 // pred_check
      _
    $region47: #{tpu_custom_call.1} parent=1 // pred_check_branch
      %109 = sbr.rel (0) target = $region49
    $region48: #{tpu_custom_call.1} parent=1 // pred_region
      %111 = dma.done [#allocation14], 2048
    $region49: #{tpu_custom_call.1} parent=1 // pred_fallthru
      _
    %p112 = scmp.eq.s32.totalorder 0, 0
    // Predicated region
    $region50: #{tpu_custom_call.1} parent=1 // pred_check
      %p113 = pneg %p112
    $region51: #{tpu_custom_call.1} parent=1 // pred_check_branch
      %115 = sbr.rel (%p113) target = $region53
    $region52: #{tpu_custom_call.1} parent=1 // pred_region
      %116 = vst [vmem:[#allocation2] sm:$0xff] 0.0
      %vm117 = vcmask 7168
      %118 = vst.msk [vmem:[#allocation3] sm:$0xff] %vm117, 0.0
    $region53: #{tpu_custom_call.1} parent=1 // pred_fallthru
      _
    %v119 = vld [vmem:[#allocation4] sm:$0xf]
    %v120 = vld [vmem:[#allocation2] sm:$0xff]
    %v121 = vld [vmem:[#allocation7] sm:$0xf]
    %v122 = vld [vmem:[#allocation7 + $0x4] sm:$0xf]
    %v123 = vld [vmem:[#allocation7 + $0x8] sm:$0xf]
    %v124 = vld [vmem:[#allocation7 + $0xc] sm:$0xf]
    %v125 = vld [vmem:[#allocation7 + $0x10] sm:$0xf]
    %v126 = vld [vmem:[#allocation7 + $0x14] sm:$0xf]
    %v127 = vld [vmem:[#allocation7 + $0x18] sm:$0xf]
    %v128 = vld [vmem:[#allocation7 + $0x1c] sm:$0xf]
    %v129 = vld [vmem:[#allocation7 + $0x20] sm:$0xf]
    %v130 = vld [vmem:[#allocation7 + $0x24] sm:$0xf]
    %v131 = vld [vmem:[#allocation7 + $0x28] sm:$0xf]
    %v132 = vld [vmem:[#allocation7 + $0x2c] sm:$0xf]
    %v133 = vld [vmem:[#allocation7 + $0x30] sm:$0xf]
    %v134 = vld [vmem:[#allocation7 + $0x34] sm:$0xf]
    %v135 = vld [vmem:[#allocation7 + $0x38] sm:$0xf]
    %v136 = vld [vmem:[#allocation7 + $0x3c] sm:$0xf]
    %v153 = vunpack.c.l.b16 %v121
    %v154 = vunpack.c.l.b16 %v122
    %v155 = vunpack.c.l.b16 %v123
    %v156 = vunpack.c.l.b16 %v124
    %v157 = vunpack.c.l.b16 %v125
    %v158 = vunpack.c.l.b16 %v126
    %v159 = vunpack.c.l.b16 %v127
    %v160 = vunpack.c.l.b16 %v128
    %v161 = vunpack.c.l.b16 %v129
    %v162 = vunpack.c.l.b16 %v130
    %v163 = vunpack.c.l.b16 %v131
    %v164 = vunpack.c.l.b16 %v132
    %v165 = vunpack.c.l.b16 %v133
    %v166 = vunpack.c.l.b16 %v134
    %v167 = vunpack.c.l.b16 %v135
    %v168 = vunpack.c.l.b16 %v136
    %v169 = vpack.c.b16 %v154, %v153
    %v170 = vpack.c.b16 %v156, %v155
    %v171 = vpack.c.b16 %v158, %v157
    %v172 = vpack.c.b16 %v160, %v159
    %v173 = vpack.c.b16 %v162, %v161
    %v174 = vpack.c.b16 %v164, %v163
    %v175 = vpack.c.b16 %v166, %v165
    %v176 = vpack.c.b16 %v168, %v167
    %185 = vmatpush.bf16.msra.mxu0 %v176
    %186 = vmatpush.bf16.msra.mxu0 %v175
    %187 = vmatpush.bf16.msra.mxu0 %v174
    %188 = vmatpush.bf16.msra.mxu0 %v173
    %189 = vmatpush.bf16.msra.mxu0 %v172
    %190 = vmatpush.bf16.msra.mxu0 %v171
    %191 = vmatpush.bf16.msra.mxu0 %v170
    %192 = vmatpush.bf16.msra.mxu0 %v169
    %193 = vmatmul.bf16.gmra.mxu0 %v119
    %v194 = vpop.f32.mrf.mxu0
    %v195 = vadd.f32 0.0, %v194
    %v196 = vpop.f32.mrf.mxu0
    %197 = vdwg.mxu0
    %v198 = vadd.f32 %v120, %v195
    %199 = vst [vmem:[#allocation2] sm:$0xff] %v198
    %v200 = vld [vmem:[#allocation3] sm:$0xff]
    %v201 = vunpack.c.l.bf16 %v119
    %202 = vadd.xlane.f32.xlu0 %v201
    %v203 = vpop.xlane.xlu0 %202
    %v204 = vadd.f32 %v200, %v203
    %vm205 = vcmask 7168
    %206 = vst.msk [vmem:[#allocation3] sm:$0xff] %vm205, %v204
    // Predicated region
    $region54: #{tpu_custom_call.1} parent=1 // pred_check
      %p207 = pneg %p112
    $region55: #{tpu_custom_call.1} parent=1 // pred_check_branch
      %209 = sbr.rel (%p207) target = $region57
    $region56: #{tpu_custom_call.1} parent=1 // pred_region
      %v210 = vld [vmem:[#allocation3] sm:$0xff]
      %vm211 = vcmp.eq.f32.partialorder %v210, 0.0
      %v212 = vsel %vm211, 1.0, %v210
      %v213 = vld [vmem:[#allocation2] sm:$0xff]
      %v214 = vrcp.pop %v212
      %216 = vset.pattern.permute.xlu0 0
      %217 = vperm.xlu0 %216, %v214
      %v218 = vpop.permute.xlu0 %217
      %v220 = vmul.f32 %v213, %v218
      %v221 = vld [vmem:[#allocation9] sm:$0xff]
      %v222 = vld [vmem:[#allocation10] sm:$0xff]
      %v223 = vld [vmem:[#allocation10 + $0x8] sm:$0xff]
      %v224 = vld [vmem:[#allocation10 + $0x10] sm:$0xff]
      %v225 = vld [vmem:[#allocation10 + $0x18] sm:$0xff]
      %v226 = vld [vmem:[#allocation10 + $0x20] sm:$0xff]
      %v227 = vld [vmem:[#allocation10 + $0x28] sm:$0xff]
      %v228 = vld [vmem:[#allocation10 + $0x30] sm:$0xff]
      %v229 = vld [vmem:[#allocation10 + $0x38] sm:$0xff]
      %v230 = vld [vmem:[#allocation10 + $0x40] sm:$0xff]
      %v231 = vld [vmem:[#allocation10 + $0x48] sm:$0xff]
      %v232 = vld [vmem:[#allocation10 + $0x50] sm:$0xff]
      %v233 = vld [vmem:[#allocation10 + $0x58] sm:$0xff]
      %v234 = vld [vmem:[#allocation10 + $0x60] sm:$0xff]
      %v235 = vld [vmem:[#allocation10 + $0x68] sm:$0xff]
      %v236 = vld [vmem:[#allocation10 + $0x70] sm:$0xff]
      %v237 = vld [vmem:[#allocation10 + $0x78] sm:$0xff]
      %v238 = vld [vmem:[#allocation10 + $0x80] sm:$0xff]
      %v239 = vld [vmem:[#allocation10 + $0x88] sm:$0xff]
      %v240 = vld [vmem:[#allocation10 + $0x90] sm:$0xff]
      %v241 = vld [vmem:[#allocation10 + $0x98] sm:$0xff]
      %v242 = vld [vmem:[#allocation10 + $0xa0] sm:$0xff]
      %v243 = vld [vmem:[#allocation10 + $0xa8] sm:$0xff]
      %v244 = vld [vmem:[#allocation10 + $0xb0] sm:$0xff]
      %v245 = vld [vmem:[#allocation10 + $0xb8] sm:$0xff]
      %v246 = vld [vmem:[#allocation10 + $0xc0] sm:$0xff]
      %v247 = vld [vmem:[#allocation10 + $0xc8] sm:$0xff]
      %v248 = vld [vmem:[#allocation10 + $0xd0] sm:$0xff]
      %v249 = vld [vmem:[#allocation10 + $0xd8] sm:$0xff]
      %v250 = vld [vmem:[#allocation10 + $0xe0] sm:$0xff]
      %v251 = vld [vmem:[#allocation10 + $0xe8] sm:$0xff]
      %v252 = vld [vmem:[#allocation10 + $0xf0] sm:$0xff]
      %v253 = vld [vmem:[#allocation10 + $0xf8] sm:$0xff]
      %v254 = vld [vmem:[#allocation10 + $0x100] sm:$0xff]
      %v255 = vld [vmem:[#allocation10 + $0x108] sm:$0xff]
      %v256 = vld [vmem:[#allocation10 + $0x110] sm:$0xff]
      %v257 = vld [vmem:[#allocation10 + $0x118] sm:$0xff]
      %v258 = vld [vmem:[#allocation10 + $0x120] sm:$0xff]
      %v259 = vld [vmem:[#allocation10 + $0x128] sm:$0xff]
      %v260 = vld [vmem:[#allocation10 + $0x130] sm:$0xff]
      %v261 = vld [vmem:[#allocation10 + $0x138] sm:$0xff]
      %v262 = vld [vmem:[#allocation10 + $0x140] sm:$0xff]
      %v263 = vld [vmem:[#allocation10 + $0x148] sm:$0xff]
      %v264 = vld [vmem:[#allocation10 + $0x150] sm:$0xff]
      %v265 = vld [vmem:[#allocation10 + $0x158] sm:$0xff]
      %v266 = vld [vmem:[#allocation10 + $0x160] sm:$0xff]
      %v267 = vld [vmem:[#allocation10 + $0x168] sm:$0xff]
      %v268 = vld [vmem:[#allocation10 + $0x170] sm:$0xff]
      %v269 = vld [vmem:[#allocation10 + $0x178] sm:$0xff]
      %v270 = vld [vmem:[#allocation10 + $0x180] sm:$0xff]
      %v271 = vld [vmem:[#allocation10 + $0x188] sm:$0xff]
      %v272 = vld [vmem:[#allocation10 + $0x190] sm:$0xff]
      %v273 = vld [vmem:[#allocation10 + $0x198] sm:$0xff]
      %v274 = vld [vmem:[#allocation10 + $0x1a0] sm:$0xff]
      %v275 = vld [vmem:[#allocation10 + $0x1a8] sm:$0xff]
      %v276 = vld [vmem:[#allocation10 + $0x1b0] sm:$0xff]
      %v277 = vld [vmem:[#allocation10 + $0x1b8] sm:$0xff]
      %v278 = vld [vmem:[#allocation10 + $0x1c0] sm:$0xff]
      %v279 = vld [vmem:[#allocation10 + $0x1c8] sm:$0xff]
      %v280 = vld [vmem:[#allocation10 + $0x1d0] sm:$0xff]
      %v281 = vld [vmem:[#allocation10 + $0x1d8] sm:$0xff]
      %v282 = vld [vmem:[#allocation10 + $0x1e0] sm:$0xff]
      %v283 = vld [vmem:[#allocation10 + $0x1e8] sm:$0xff]
      %v284 = vld [vmem:[#allocation10 + $0x1f0] sm:$0xff]
      %v285 = vld [vmem:[#allocation10 + $0x1f8] sm:$0xff]
      %v286 = vld [vmem:[#allocation10 + $0x200] sm:$0xff]
      %v287 = vld [vmem:[#allocation10 + $0x208] sm:$0xff]
      %v288 = vld [vmem:[#allocation10 + $0x210] sm:$0xff]
      %v289 = vld [vmem:[#allocation10 + $0x218] sm:$0xff]
      %v290 = vld [vmem:[#allocation10 + $0x220] sm:$0xff]
      %v291 = vld [vmem:[#allocation10 + $0x228] sm:$0xff]
      %v292 = vld [vmem:[#allocation10 + $0x230] sm:$0xff]
      %v293 = vld [vmem:[#allocation10 + $0x238] sm:$0xff]
      %v294 = vld [vmem:[#allocation10 + $0x240] sm:$0xff]
      %v295 = vld [vmem:[#allocation10 + $0x248] sm:$0xff]
      %v296 = vld [vmem:[#allocation10 + $0x250] sm:$0xff]
      %v297 = vld [vmem:[#allocation10 + $0x258] sm:$0xff]
      %v298 = vld [vmem:[#allocation10 + $0x260] sm:$0xff]
      %v299 = vld [vmem:[#allocation10 + $0x268] sm:$0xff]
      %v300 = vld [vmem:[#allocation10 + $0x270] sm:$0xff]
      %v301 = vld [vmem:[#allocation10 + $0x278] sm:$0xff]
      %v302 = vld [vmem:[#allocation10 + $0x280] sm:$0xff]
      %v303 = vld [vmem:[#allocation10 + $0x288] sm:$0xff]
      %v304 = vld [vmem:[#allocation10 + $0x290] sm:$0xff]
      %v305 = vld [vmem:[#allocation10 + $0x298] sm:$0xff]
      %v306 = vld [vmem:[#allocation10 + $0x2a0] sm:$0xff]
      %v307 = vld [vmem:[#allocation10 + $0x2a8] sm:$0xff]
      %v308 = vld [vmem:[#allocation10 + $0x2b0] sm:$0xff]
      %v309 = vld [vmem:[#allocation10 + $0x2b8] sm:$0xff]
      %v310 = vld [vmem:[#allocation10 + $0x2c0] sm:$0xff]
      %v311 = vld [vmem:[#allocation10 + $0x2c8] sm:$0xff]
      %v312 = vld [vmem:[#allocation10 + $0x2d0] sm:$0xff]
      %v313 = vld [vmem:[#allocation10 + $0x2d8] sm:$0xff]
      %v314 = vld [vmem:[#allocation10 + $0x2e0] sm:$0xff]
      %v315 = vld [vmem:[#allocation10 + $0x2e8] sm:$0xff]
      %v316 = vld [vmem:[#allocation10 + $0x2f0] sm:$0xff]
      %v317 = vld [vmem:[#allocation10 + $0x2f8] sm:$0xff]
      %v318 = vld [vmem:[#allocation10 + $0x300] sm:$0xff]
      %v319 = vld [vmem:[#allocation10 + $0x308] sm:$0xff]
      %v320 = vld [vmem:[#allocation10 + $0x310] sm:$0xff]
      %v321 = vld [vmem:[#allocation10 + $0x318] sm:$0xff]
      %v322 = vld [vmem:[#allocation10 + $0x320] sm:$0xff]
      %v323 = vld [vmem:[#allocation10 + $0x328] sm:$0xff]
      %v324 = vld [vmem:[#allocation10 + $0x330] sm:$0xff]
      %v325 = vld [vmem:[#allocation10 + $0x338] sm:$0xff]
      %v326 = vld [vmem:[#allocation10 + $0x340] sm:$0xff]
      %v327 = vld [vmem:[#allocation10 + $0x348] sm:$0xff]
      %v328 = vld [vmem:[#allocation10 + $0x350] sm:$0xff]
      %v329 = vld [vmem:[#allocation10 + $0x358] sm:$0xff]
      %v330 = vld [vmem:[#allocation10 + $0x360] sm:$0xff]
      %v331 = vld [vmem:[#allocation10 + $0x368] sm:$0xff]
      %v332 = vld [vmem:[#allocation10 + $0x370] sm:$0xff]
      %v333 = vld [vmem:[#allocation10 + $0x378] sm:$0xff]
      %v334 = vld [vmem:[#allocation10 + $0x380] sm:$0xff]
      %v335 = vld [vmem:[#allocation10 + $0x388] sm:$0xff]
      %v336 = vld [vmem:[#allocation10 + $0x390] sm:$0xff]
      %v337 = vld [vmem:[#allocation10 + $0x398] sm:$0xff]
      %v338 = vld [vmem:[#allocation10 + $0x3a0] sm:$0xff]
      %v339 = vld [vmem:[#allocation10 + $0x3a8] sm:$0xff]
      %v340 = vld [vmem:[#allocation10 + $0x3b0] sm:$0xff]
      %v341 = vld [vmem:[#allocation10 + $0x3b8] sm:$0xff]
      %v342 = vld [vmem:[#allocation10 + $0x3c0] sm:$0xff]
      %v343 = vld [vmem:[#allocation10 + $0x3c8] sm:$0xff]
      %v344 = vld [vmem:[#allocation10 + $0x3d0] sm:$0xff]
      %v345 = vld [vmem:[#allocation10 + $0x3d8] sm:$0xff]
      %v346 = vld [vmem:[#allocation10 + $0x3e0] sm:$0xff]
      %v347 = vld [vmem:[#allocation10 + $0x3e8] sm:$0xff]
      %v348 = vld [vmem:[#allocation10 + $0x3f0] sm:$0xff]
      %v349 = vld [vmem:[#allocation10 + $0x3f8] sm:$0xff]
      %350 = vmatpush.msra.mxu0 %v342
      %351 = vmatpush.msra.mxu0 %v334
      %352 = vmatpush.msra.mxu0 %v326
      %353 = vmatpush.msra.mxu0 %v318
      %354 = vmatpush.msra.mxu0 %v310
      %355 = vmatpush.msra.mxu0 %v302
      %356 = vmatpush.msra.mxu0 %v294
      %357 = vmatpush.msra.mxu0 %v286
      %358 = vmatpush.msra.mxu0 %v278
      %359 = vmatpush.msra.mxu0 %v270
      %360 = vmatpush.msra.mxu0 %v262
      %361 = vmatpush.msra.mxu0 %v254
      %362 = vmatpush.msra.mxu0 %v246
      %363 = vmatpush.msra.mxu0 %v238
      %364 = vmatpush.msra.mxu0 %v230
      %365 = vmatpush.msra.mxu0 %v222
      %366 = vmatmul.f32.gmra.mxu0 %v221
      %v367 = vpop.f32.mrf.mxu0
      %v368 = vadd.f32 0.0, %v367
      %369 = vmatmul.f32.gmra.mxu0 %v220
      %v370 = vpop.f32.mrf.mxu0
      %v371 = vadd.f32 0.0, %v370
      %372 = vdwg.mxu0
      %373 = vmatpush.msra.mxu0 %v343
      %374 = vmatpush.msra.mxu0 %v335
      %375 = vmatpush.msra.mxu0 %v327
      %376 = vmatpush.msra.mxu0 %v319
      %377 = vmatpush.msra.mxu0 %v311
      %378 = vmatpush.msra.mxu0 %v303
      %379 = vmatpush.msra.mxu0 %v295
      %380 = vmatpush.msra.mxu0 %v287
      %381 = vmatpush.msra.mxu0 %v279
      %382 = vmatpush.msra.mxu0 %v271
      %383 = vmatpush.msra.mxu0 %v263
      %384 = vmatpush.msra.mxu0 %v255
      %385 = vmatpush.msra.mxu0 %v247
      %386 = vmatpush.msra.mxu0 %v239
      %387 = vmatpush.msra.mxu0 %v231
      %388 = vmatpush.msra.mxu0 %v223
      %389 = vmatmul.f32.gmra.mxu0 %v221
      %v390 = vpop.f32.mrf.mxu0
      %v391 = vadd.f32 0.0, %v390
      %392 = vmatmul.f32.gmra.mxu0 %v220
      %v393 = vpop.f32.mrf.mxu0
      %v394 = vadd.f32 0.0, %v393
      %395 = vdwg.mxu0
      %396 = vmatpush.msra.mxu0 %v344
      %397 = vmatpush.msra.mxu0 %v336
      %398 = vmatpush.msra.mxu0 %v328
      %399 = vmatpush.msra.mxu0 %v320
      %400 = vmatpush.msra.mxu0 %v312
      %401 = vmatpush.msra.mxu0 %v304
      %402 = vmatpush.msra.mxu0 %v296
      %403 = vmatpush.msra.mxu0 %v288
      %404 = vmatpush.msra.mxu0 %v280
      %405 = vmatpush.msra.mxu0 %v272
      %406 = vmatpush.msra.mxu0 %v264
      %407 = vmatpush.msra.mxu0 %v256
      %408 = vmatpush.msra.mxu0 %v248
      %409 = vmatpush.msra.mxu0 %v240
      %410 = vmatpush.msra.mxu0 %v232
      %411 = vmatpush.msra.mxu0 %v224
      %412 = vmatmul.f32.gmra.mxu0 %v221
      %v413 = vpop.f32.mrf.mxu0
      %v414 = vadd.f32 0.0, %v413
      %415 = vmatmul.f32.gmra.mxu0 %v220
      %v416 = vpop.f32.mrf.mxu0
      %v417 = vadd.f32 0.0, %v416
      %418 = vdwg.mxu0
      %419 = vmatpush.msra.mxu0 %v345
      %420 = vmatpush.msra.mxu0 %v337
      %421 = vmatpush.msra.mxu0 %v329
      %422 = vmatpush.msra.mxu0 %v321
      %423 = vmatpush.msra.mxu0 %v313
      %424 = vmatpush.msra.mxu0 %v305
      %425 = vmatpush.msra.mxu0 %v297
      %426 = vmatpush.msra.mxu0 %v289
      %427 = vmatpush.msra.mxu0 %v281
      %428 = vmatpush.msra.mxu0 %v273
      %429 = vmatpush.msra.mxu0 %v265
      %430 = vmatpush.msra.mxu0 %v257
      %431 = vmatpush.msra.mxu0 %v249
      %432 = vmatpush.msra.mxu0 %v241
      %433 = vmatpush.msra.mxu0 %v233
      %434 = vmatpush.msra.mxu0 %v225
      %435 = vmatmul.f32.gmra.mxu0 %v221
      %v436 = vpop.f32.mrf.mxu0
      %v437 = vadd.f32 0.0, %v436
      %438 = vmatmul.f32.gmra.mxu0 %v220
      %v439 = vpop.f32.mrf.mxu0
      %v440 = vadd.f32 0.0, %v439
      %441 = vdwg.mxu0
      %442 = vmatpush.msra.mxu0 %v346
      %443 = vmatpush.msra.mxu0 %v338
      %444 = vmatpush.msra.mxu0 %v330
      %445 = vmatpush.msra.mxu0 %v322
      %446 = vmatpush.msra.mxu0 %v314
      %447 = vmatpush.msra.mxu0 %v306
      %448 = vmatpush.msra.mxu0 %v298
      %449 = vmatpush.msra.mxu0 %v290
      %450 = vmatpush.msra.mxu0 %v282
      %451 = vmatpush.msra.mxu0 %v274
      %452 = vmatpush.msra.mxu0 %v266
      %453 = vmatpush.msra.mxu0 %v258
      %454 = vmatpush.msra.mxu0 %v250
      %455 = vmatpush.msra.mxu0 %v242
      %456 = vmatpush.msra.mxu0 %v234
      %457 = vmatpush.msra.mxu0 %v226
      %458 = vmatmul.f32.gmra.mxu0 %v221
      %v459 = vpop.f32.mrf.mxu0
      %v460 = vadd.f32 0.0, %v459
      %461 = vmatmul.f32.gmra.mxu0 %v220
      %v462 = vpop.f32.mrf.mxu0
      %v463 = vadd.f32 0.0, %v462
      %464 = vdwg.mxu0
      %465 = vmatpush.msra.mxu0 %v347
      %466 = vmatpush.msra.mxu0 %v339
      %467 = vmatpush.msra.mxu0 %v331
      %468 = vmatpush.msra.mxu0 %v323
      %469 = vmatpush.msra.mxu0 %v315
      %470 = vmatpush.msra.mxu0 %v307
      %471 = vmatpush.msra.mxu0 %v299
      %472 = vmatpush.msra.mxu0 %v291
      %473 = vmatpush.msra.mxu0 %v283
      %474 = vmatpush.msra.mxu0 %v275
      %475 = vmatpush.msra.mxu0 %v267
      %476 = vmatpush.msra.mxu0 %v259
      %477 = vmatpush.msra.mxu0 %v251
      %478 = vmatpush.msra.mxu0 %v243
      %479 = vmatpush.msra.mxu0 %v235
      %480 = vmatpush.msra.mxu0 %v227
      %481 = vmatmul.f32.gmra.mxu0 %v221
      %v482 = vpop.f32.mrf.mxu0
      %v483 = vadd.f32 0.0, %v482
      %484 = vmatmul.f32.gmra.mxu0 %v220
      %v485 = vpop.f32.mrf.mxu0
      %v486 = vadd.f32 0.0, %v485
      %487 = vdwg.mxu0
      %488 = vmatpush.msra.mxu0 %v348
      %489 = vmatpush.msra.mxu0 %v340
      %490 = vmatpush.msra.mxu0 %v332
      %491 = vmatpush.msra.mxu0 %v324
      %492 = vmatpush.msra.mxu0 %v316
      %493 = vmatpush.msra.mxu0 %v308
      %494 = vmatpush.msra.mxu0 %v300
      %495 = vmatpush.msra.mxu0 %v292
      %496 = vmatpush.msra.mxu0 %v284
      %497 = vmatpush.msra.mxu0 %v276
      %498 = vmatpush.msra.mxu0 %v268
      %499 = vmatpush.msra.mxu0 %v260
      %500 = vmatpush.msra.mxu0 %v252
      %501 = vmatpush.msra.mxu0 %v244
      %502 = vmatpush.msra.mxu0 %v236
      %503 = vmatpush.msra.mxu0 %v228
      %504 = vmatmul.f32.gmra.mxu0 %v221
      %v505 = vpop.f32.mrf.mxu0
      %v506 = vadd.f32 0.0, %v505
      %507 = vmatmul.f32.gmra.mxu0 %v220
      %v508 = vpop.f32.mrf.mxu0
      %v509 = vadd.f32 0.0, %v508
      %510 = vdwg.mxu0
      %511 = vmatpush.msra.mxu0 %v349
      %512 = vmatpush.msra.mxu0 %v341
      %513 = vmatpush.msra.mxu0 %v333
      %514 = vmatpush.msra.mxu0 %v325
      %515 = vmatpush.msra.mxu0 %v317
      %516 = vmatpush.msra.mxu0 %v309
      %517 = vmatpush.msra.mxu0 %v301
      %518 = vmatpush.msra.mxu0 %v293
      %519 = vmatpush.msra.mxu0 %v285
      %520 = vmatpush.msra.mxu0 %v277
      %521 = vmatpush.msra.mxu0 %v269
      %522 = vmatpush.msra.mxu0 %v261
      %523 = vmatpush.msra.mxu0 %v253
      %524 = vmatpush.msra.mxu0 %v245
      %525 = vmatpush.msra.mxu0 %v237
      %526 = vmatpush.msra.mxu0 %v229
      %527 = vmatmul.f32.gmra.mxu0 %v221
      %v528 = vpop.f32.mrf.mxu0
      %v529 = vadd.f32 0.0, %v528
      %530 = vmatmul.f32.gmra.mxu0 %v220
      %v531 = vpop.f32.mrf.mxu0
      %v532 = vadd.f32 0.0, %v531
      %533 = vdwg.mxu0
      %v534 = vtanh.pop %v368
      %v535 = vtanh.pop %v391
      %v536 = vtanh.pop %v414
      %v537 = vtanh.pop %v437
      %v538 = vtanh.pop %v460
      %v539 = vtanh.pop %v483
      %v540 = vtanh.pop %v506
      %v541 = vtanh.pop %v529
      %v542 = vtanh.pop %v371
      %v543 = vtanh.pop %v394
      %v544 = vtanh.pop %v417
      %v545 = vtanh.pop %v440
      %v546 = vtanh.pop %v463
      %v547 = vtanh.pop %v486
      %v548 = vtanh.pop %v509
      %v549 = vtanh.pop %v532
      %v550 = vld [vmem:[#allocation12] sm:$0xff]
      %v552 = vperm.slane %v550, 0
      %v553 = vperm.slane %v550, 1
      %v554 = vperm.slane %v550, 2
      %v555 = vperm.slane %v550, 3
      %v556 = vperm.slane %v550, 4
      %v557 = vperm.slane %v550, 5
      %v558 = vperm.slane %v550, 6
      %v559 = vperm.slane %v550, 7
      %v568 = vmul.f32 %v534, %v552
      %v569 = vmul.f32 %v535, %v553
      %v570 = vmul.f32 %v536, %v554
      %v571 = vmul.f32 %v537, %v555
      %v572 = vmul.f32 %v538, %v556
      %v573 = vmul.f32 %v539, %v557
      %v574 = vmul.f32 %v540, %v558
      %v575 = vmul.f32 %v541, %v559
      %v576 = vmul.f32 %v542, %v552
      %v577 = vmul.f32 %v543, %v553
      %v578 = vmul.f32 %v544, %v554
      %v579 = vmul.f32 %v545, %v555
      %v580 = vmul.f32 %v546, %v556
      %v581 = vmul.f32 %v547, %v557
      %v582 = vmul.f32 %v548, %v558
      %v583 = vmul.f32 %v549, %v559
      %v584 = vadd.f32 %v568, %v569
      %v585 = vadd.f32 %v584, %v570
      %v586 = vadd.f32 %v585, %v571
      %v587 = vadd.f32 %v586, %v572
      %v588 = vadd.f32 %v587, %v573
      %v589 = vadd.f32 %v588, %v574
      %v590 = vadd.f32 %v589, %v575
      %591 = vadd.xlane.f32.xlu0 %v590
      %v592 = vpop.xlane.xlu0 %591
      %v593 = vrot.slane %v592, 4
      %v594 = vadd.f32 %v592, %v593
      %v595 = vrot.slane %v594, 2
      %v596 = vadd.f32 %v594, %v595
      %v597 = vrot.slane %v596, 1
      %v598 = vadd.f32 %v596, %v597
      %v599 = vmul.f32 %v598, 0.125
      %v600 = vadd.f32 %v576, %v577
      %v601 = vadd.f32 %v600, %v578
      %v602 = vadd.f32 %v601, %v579
      %v603 = vadd.f32 %v602, %v580
      %v604 = vadd.f32 %v603, %v581
      %v605 = vadd.f32 %v604, %v582
      %v606 = vadd.f32 %v605, %v583
      %607 = vadd.xlane.f32.xlu0 %v606
      %v608 = vpop.xlane.xlu0 %607
      %v609 = vrot.slane %v608, 4
      %v610 = vadd.f32 %v608, %v609
      %v611 = vrot.slane %v610, 2
      %v612 = vadd.f32 %v610, %v611
      %v613 = vrot.slane %v612, 1
      %v614 = vadd.f32 %v612, %v613
      %v615 = vmul.f32 %v614, 0.125
      %v616 = vmax.f32 %v599, %v615
      %v617 = vsub.f32 %v599, %v616
      %v618 = vmul.f32 %v617, 1.442695
      %v619 = vpow.pop %v618
      %v620 = vsub.f32 %v615, %v616
      %v621 = vmul.f32 %v620, 1.442695
      %v622 = vpow.pop %v621
      %v623 = vadd.f32 %v619, %v622
      %v624 = vrcp.pop %v623
      %v625 = vmul.f32 %v623, %v624
      %v626 = vsub.f32 1.0, %v625
      %v627 = vmul.f32 %v624, %v626
      %v628 = vadd.f32 %v624, %v627
      %vm629 = vweird.f32 %v623
      %vm630 = vweird.f32 %v624
      %vm631 = vmor %vm629, %vm630
      %v632 = vsel %vm631, %v624, %v628
      %v633 = vand.u32 2147483647, %v623
      %vm634 = vcmp.eq.f32.partialorder %v633, 8.507059e+37
      %v635 = vand.u32 %v623, 2147483648
      %v636 = vor.u32 1.1754944e-38, %v635
      %v637 = vsel %vm634, %v636, %v632
      %v638 = vmul.f32 %v619, %v637
      %v639 = vmul.f32 %v622, %v637
      %v640 = vmul.f32 %v638, %v221
      %v641 = vmul.f32 %v639, %v220
      %v642 = vadd.f32 %v640, %v641
      %v643 = vmax.f32 %v642, 0.0
      %v644 = vld [vmem:[#allocation13] sm:$0xff]
      %v645 = vld [vmem:[#allocation13 + $0x8] sm:$0xff]
      %v646 = vld [vmem:[#allocation13 + $0x10] sm:$0xff]
      %v647 = vld [vmem:[#allocation13 + $0x18] sm:$0xff]
      %v648 = vld [vmem:[#allocation13 + $0x20] sm:$0xff]
      %v649 = vld [vmem:[#allocation13 + $0x28] sm:$0xff]
      %v650 = vld [vmem:[#allocation13 + $0x30] sm:$0xff]
      %v651 = vld [vmem:[#allocation13 + $0x38] sm:$0xff]
      %v652 = vld [vmem:[#allocation13 + $0x40] sm:$0xff]
      %v653 = vld [vmem:[#allocation13 + $0x48] sm:$0xff]
      %v654 = vld [vmem:[#allocation13 + $0x50] sm:$0xff]
      %v655 = vld [vmem:[#allocation13 + $0x58] sm:$0xff]
      %v656 = vld [vmem:[#allocation13 + $0x60] sm:$0xff]
      %v657 = vld [vmem:[#allocation13 + $0x68] sm:$0xff]
      %v658 = vld [vmem:[#allocation13 + $0x70] sm:$0xff]
      %v659 = vld [vmem:[#allocation13 + $0x78] sm:$0xff]
      %660 = vmatpush.msra.mxu0 %v659
      %661 = vmatpush.msra.mxu0 %v658
      %662 = vmatpush.msra.mxu0 %v657
      %663 = vmatpush.msra.mxu0 %v656
      %664 = vmatpush.msra.mxu0 %v655
      %665 = vmatpush.msra.mxu0 %v654
      %666 = vmatpush.msra.mxu0 %v653
      %667 = vmatpush.msra.mxu0 %v652
      %668 = vmatpush.msra.mxu0 %v651
      %669 = vmatpush.msra.mxu0 %v650
      %670 = vmatpush.msra.mxu0 %v649
      %671 = vmatpush.msra.mxu0 %v648
      %672 = vmatpush.msra.mxu0 %v647
      %673 = vmatpush.msra.mxu0 %v646
      %674 = vmatpush.msra.mxu0 %v645
      %675 = vmatpush.msra.mxu0 %v644
      %676 = vmatmul.f32.gmra.mxu0 %v643
      %v677 = vpop.f32.mrf.mxu0
      %v678 = vadd.f32 0.0, %v677
      %679 = vdwg.mxu0
      %v680 = vmax.f32 %v678, 0.0
      %681 = vst [vmem:[#allocation15] sm:$0xff] %v680
    $region57: #{tpu_custom_call.1} parent=1 // pred_fallthru
      _
    // Predicated region
    $region58: #{tpu_custom_call.1} parent=1 // pred_check
      _
    $region59: #{tpu_custom_call.1} parent=1 // pred_check_branch
      %683 = sbr.rel (0) target = $region61
    $region60: #{tpu_custom_call.1} parent=1 // pred_region
      %685 = vsyncadd [#allocation6], 0
      %s687 = sshll.u32 [#allocation15], 4
      %s688 = int_to_ptr.vmem [resolvable:$true] %s687
      %s689 = sshll.u32 %s6, 4
      %s690 = int_to_ptr.hbm [resolvable:$true] %s689
      %692 = dma.vmem_to_hbm [thread:$0]  %s688, 128, %s690, [#allocation6]
    $region61: #{tpu_custom_call.1} parent=1 // pred_fallthru
      _
    // Predicated region
    $region62: #{tpu_custom_call.1} parent=1 // pred_check
      _
    $region63: #{tpu_custom_call.1} parent=1 // pred_check_branch
      %694 = sbr.rel (0) target = $region65
    $region64: #{tpu_custom_call.1} parent=1 // pred_region
      %696 = dma.done [#allocation6], 128
    $region65: #{tpu_custom_call.1} parent=1 // pred_fallthru
      _
    %697 = vsyncpa [#allocation5], 1
    %698 = vsyncpa [#allocation8], 1
    %699 = vsyncpa [#allocation11], 1
    %700 = vsyncpa [#allocation14], 1
    %701 = vsyncpa [#allocation6], 1

</llo_original>
